<compile_context>
chip_gen: v7x
topology: tpu7x:2x2x1
jax: 0.10.0
libtpu: 0.0.40
codegen_flags: <defaults>
</compile_context>

<pallas_src>
import jax
import jax.numpy as jnp
from jax.experimental import pallas as pl
from jax.experimental.pallas import tpu as pltpu

LANES = 128


def _hsigmoid_kernel(x_ref, o_ref):
    x = x_ref[...]
    # relu6(x + 3) / 6  ==  clamp(x + 3, 0, 6) / 6
    o_ref[...] = (jnp.clip(x + 3.0, 0.0, 6.0) / 6.0).astype(o_ref.dtype)


def _sublane_unit(dtype):
    # native packed-tile row unit: 8 for 4-byte, 16 for 2-byte, 32 for 1-byte
    itemsize = jnp.dtype(dtype).itemsize
    return max(8, 32 // itemsize)


def _hsigmoid_2d(x2d, *, block_bytes=1 << 20):
    """Run the elementwise kernel on a (rows, 128) lane-dense slab."""
    rows, lanes = x2d.shape
    itemsize = jnp.dtype(x2d.dtype).itemsize
    sub = _sublane_unit(x2d.dtype)

    # ~1 MiB per block buffer, rounded to the dtype's sublane packing unit.
    tr = max(sub, (block_bytes // (lanes * itemsize)) // sub * sub)
    # Don't make the block larger than the (sublane-rounded) array.
    rows_rounded = ((rows + sub - 1) // sub) * sub
    tr = min(tr, rows_rounded)

    n = rows * lanes
    cost = pl.CostEstimate(
        flops=3 * n, transcendentals=0, bytes_accessed=2 * n * itemsize
    )

    return pl.pallas_call(
        _hsigmoid_kernel,
        out_shape=jax.ShapeDtypeStruct((rows, lanes), x2d.dtype),
        grid_spec=pltpu.PrefetchScalarGridSpec(
            num_scalar_prefetch=0,
            grid=(pl.cdiv(rows, tr),),
            in_specs=[pl.BlockSpec((tr, lanes), lambda i: (i, 0))],
            out_specs=pl.BlockSpec((tr, lanes), lambda i: (i, 0)),
        ),
        compiler_params=pltpu.CompilerParams(
            dimension_semantics=("parallel",),
        ),
        cost_estimate=cost,
    )(x2d)


def hsigmoid(x):
    """Elementwise hard-sigmoid via a Pallas TPU kernel. Accepts any shape."""
    if not jnp.issubdtype(x.dtype, jnp.floating):
        raise ValueError(f"hsigmoid expects a floating dtype, got {x.dtype}")
    orig_shape = x.shape
    n = x.size

    if n % LANES == 0:
        # Fast path: no padding, no extra HBM passes — just a free reshape.
        out2d = _hsigmoid_2d(x.reshape(n // LANES, LANES))
        return out2d.reshape(orig_shape)

    # Rare ragged path: pad flat length to a multiple of 128, slice back after.
    n_pad = ((n + LANES - 1) // LANES) * LANES
    flat = jnp.pad(jnp.ravel(x), (0, n_pad - n))
    out2d = _hsigmoid_2d(flat.reshape(n_pad // LANES, LANES))
    return out2d.reshape(-1)[:n].reshape(orig_shape)


if __name__ == "__main__":
    key = jax.random.PRNGKey(0)
    # NCHW input, same convention as the PyTorch module's typical usage.
    x = jax.random.normal(key, (2, 4, 16, 16), dtype=jnp.float32) * 4.0

    y = hsigmoid(x)
    y = jax.block_until_ready(y)

    # reference check against pure-JAX semantics of relu6(x+3)/6
    y_ref = jnp.clip(x + 3.0, 0.0, 6.0) / 6.0
    assert y.shape == x.shape and y.dtype == x.dtype
    assert jnp.max(jnp.abs(y - y_ref)) < 1e-6

    print("KERNEL_OK")
</pallas_src>

<mosaic_0001>
module attributes {stable_mosaic.version = 11 : i64} {
  func.func @_hsigmoid_kernel(%arg0: i32, %arg1: memref<16x128xf32, #tpu.memory_space<vmem>>, %arg2: memref<16x128xf32, #tpu.memory_space<vmem>>) attributes {dimension_semantics = [#tpu.dimension_semantics<parallel>], iteration_bounds = array<i64: 1>, scalar_prefetch = 0 : i64, scratch_operands = 0 : i64, tpu.core_type = #tpu.core_type<tc>, window_params = [{transform_indices = @transform_0, window_bounds = array<i64: 16, 128>}, {transform_indices = @transform_1, window_bounds = array<i64: 16, 128>}]} {
    %c0 = arith.constant 0 : index
    %c0_0 = arith.constant 0 : index
    %0 = vector.load %arg1[%c0, %c0_0] : memref<16x128xf32, #tpu.memory_space<vmem>>, vector<16x128xf32>
    %cst = arith.constant 3.000000e+00 : f32
    %1 = vector.broadcast %cst : f32 to vector<16x128xf32>
    %2 = arith.addf %0, %1 : vector<16x128xf32>
    %cst_1 = arith.constant 0.000000e+00 : f32
    %cst_2 = arith.constant 6.000000e+00 : f32
    %3 = vector.broadcast %cst_1 : f32 to vector<16x128xf32>
    %4 = arith.maximumf %3, %2 : vector<16x128xf32>
    %5 = vector.broadcast %cst_2 : f32 to vector<16x128xf32>
    %6 = arith.minimumf %5, %4 : vector<16x128xf32>
    %cst_3 = arith.constant 6.000000e+00 : f32
    %7 = vector.broadcast %cst_3 : f32 to vector<16x128xf32>
    %8 = arith.divf %6, %7 : vector<16x128xf32>
    %c0_4 = arith.constant 0 : index
    %c0_5 = arith.constant 0 : index
    %9 = vector.load %arg2[%c0_4, %c0_5] : memref<16x128xf32, #tpu.memory_space<vmem>>, vector<16x128xf32>
    tpu.vector_store %arg2[%c0_4, %c0_5], %8 {strides = array<i32>} : memref<16x128xf32, #tpu.memory_space<vmem>>, vector<16x128xf32>,
    return
  }
  func.func @transform_0(%arg0: i32) -> (i32, i32) {
    %c0_i32 = arith.constant 0 : i32
    %c0_i32_0 = arith.constant 0 : i32
    return %arg0, %c0_i32 : i32, i32
  }
  func.func @transform_1(%arg0: i32) -> (i32, i32) {
    %c0_i32 = arith.constant 0 : i32
    %c0_i32_0 = arith.constant 0 : i32
    return %arg0, %c0_i32 : i32, i32
  }
}

</mosaic_0001>

<llo_original>
// kernel: tpu_custom_call.1
$region0: #{tpu_custom_call.1}
  #allocation0 [shape = 'u32[]', space=smem, size = 0x4, offset = 0x4, fixed_abs, tag = 'smem constant byte address 0x4 - core index']
  #allocation1 [shape = 'u32[144,128]{1,0:T(1,128)}', space=vmem, size = 0x12000, scoped, tag = 'internal scratch']
  %s0 = inlined_call_operand.hbm [shape: f32[16,128], index: 0, kind: input, shape index: {}]
  %s1 = inlined_call_operand.hbm [shape: f32[16,128], index: 1, kind: output, shape index: {}]
  %s2 = sld [smem:[#allocation0]]
  $region18: #{tpu_custom_call.1} parent=0
    _
  %s4 = ssub.s32 1, %s2
  %s5 = scalar_select 0, %s4, %s2
  $region1: #{tpu_custom_call.1} parent=0
    #allocation2 [shape = 'u8[8192]{0}', space=vmem, size = 0x2000, scoped, tag = 'input window, operand 0, single buffered']
    #allocation3 [shape = 's32[1]{0}', space=sflag, size = 0x4, scoped, tag = 'scoped memory for tpu_custom_call.1']
    #allocation4 [shape = 's32[1]{0}', space=sflag, size = 0x4, scoped, tag = 'scoped memory for tpu_custom_call.1']
    #allocation5 [shape = 'u8[8192]{0}', space=vmem, size = 0x2000, scoped, tag = 'output window, operand 0, single buffered']
    %6 = vsyncpa [#allocation3], 0
    %7 = vsyncpa [#allocation4], 0
    // Predicated region
    $region2: #{tpu_custom_call.1} parent=1 // pred_check
      _
    $region3: #{tpu_custom_call.1} parent=1 // pred_check_branch
      %9 = sbr.rel (0) target = $region5
    $region4: #{tpu_custom_call.1} parent=1 // pred_region
      %s11 = ssub.s32 256, 256
      %12 = vsyncadd [#allocation3], %s11
      %s13 = sshll.u32 [#allocation2], 4
      %s14 = int_to_ptr.vmem [resolvable:$true] %s13
      %19 = dma.hbm_to_vmem [thread:$0]  %s0, 256, %s14, [#allocation3], 128, 128, 8
    $region5: #{tpu_custom_call.1} parent=1 // pred_fallthru
      _
    // Predicated region
    $region6: #{tpu_custom_call.1} parent=1 // pred_check
      _
    $region7: #{tpu_custom_call.1} parent=1 // pred_check_branch
      %21 = sbr.rel (0) target = $region9
    $region8: #{tpu_custom_call.1} parent=1 // pred_region
      %22 = dma.done [#allocation3], 256
    $region9: #{tpu_custom_call.1} parent=1 // pred_fallthru
      _
    %v23 = vld [vmem:[#allocation2] sm:$0xff]
    %v24 = vld [vmem:[#allocation2 + $0x8] sm:$0xff]
    %v25 = vadd.f32 %v23, 3.0
    %v26 = vadd.f32 %v24, 3.0
    %v27 = vmax.f32 %v25, 0.0
    %v28 = vmax.f32 %v26, 0.0
    %v29 = vmin.f32 %v27, 6.0
    %v30 = vmin.f32 %v28, 6.0
    %v31 = vrcp.pop 6.0
    %v32 = vmul.f32 %v29, %v31
    %v33 = vmul.f32 %v30, %v31
    %34 = vst [vmem:[#allocation5] sm:$0xff] %v32
    %35 = vst [vmem:[#allocation5 + $0x8] sm:$0xff] %v33
    // Predicated region
    $region10: #{tpu_custom_call.1} parent=1 // pred_check
      _
    $region11: #{tpu_custom_call.1} parent=1 // pred_check_branch
      %37 = sbr.rel (0) target = $region13
    $region12: #{tpu_custom_call.1} parent=1 // pred_region
      %s39 = ssub.s32 256, 256
      %40 = vsyncadd [#allocation4], %s39
      %s41 = sshll.u32 [#allocation5], 4
      %s42 = int_to_ptr.vmem [resolvable:$true] %s41
      %47 = dma.vmem_to_hbm [thread:$0]  %s42, 256, %s1, [#allocation4], 128, 128, 8
    $region13: #{tpu_custom_call.1} parent=1 // pred_fallthru
      _
    // Predicated region
    $region14: #{tpu_custom_call.1} parent=1 // pred_check
      _
    $region15: #{tpu_custom_call.1} parent=1 // pred_check_branch
      %49 = sbr.rel (0) target = $region17
    $region16: #{tpu_custom_call.1} parent=1 // pred_region
      %50 = dma.done [#allocation4], 256
    $region17: #{tpu_custom_call.1} parent=1 // pred_fallthru
      _
    %51 = vsyncpa [#allocation3], 1
    %52 = vsyncpa [#allocation4], 1

</llo_original>
